<compile_context>
chip_gen: v7x
topology: tpu7x:2x2x1
jax: 0.10.0
libtpu: 0.0.40
codegen_flags: <defaults>
</compile_context>

<pallas_src>
import functools

import jax
import jax.numpy as jnp
from jax import lax
from jax.experimental import pallas as pl
from jax.experimental.pallas import tpu as pltpu


def _round_up(a, b):
    return (a + b - 1) // b * b


def _budgets():
    """(per-input block byte target, vmem_limit cap), sized per TPU generation."""
    kind = ""
    try:
        kind = jax.devices()[0].device_kind.lower()
    except Exception:
        pass
    if ("v5" in kind) or ("v6" in kind):
        # 128 MiB physical VMEM: bigger blocks + higher scoped limit are safe.
        return 8 << 20, 96 << 20
    # Conservative default, safe on v7x (64 MiB VMEM per TensorCore).
    return 7 << 20, 48 << 20


def _vmem_limit(est_bytes, cap_bytes):
    return int(min(cap_bytes, max(16 << 20, int(1.5 * est_bytes))))


def _out_dtype(x, y):
    dt = jnp.result_type(x.dtype, y.dtype)
    if not jnp.issubdtype(dt, jnp.floating):
        dt = jnp.float32
    return dt


_PAIRWISE_MAX_D = 8192  # feature dim handled as a single K block on the MXU path


# ------------------------------ kernels --------------------------------------

def _rowwise_cosine_kernel(x_ref, y_ref, o_ref, *, inv_temp, eps):
    """cos(x_r, y_r) * inv_temp for a (TILE_M, D) row block (single K block)."""
    x = x_ref[...].astype(jnp.float32)
    y = y_ref[...].astype(jnp.float32)
    dot = jnp.sum(x * y, axis=-1, keepdims=True)
    xx = jnp.sum(x * x, axis=-1, keepdims=True)
    yy = jnp.sum(y * y, axis=-1, keepdims=True)
    # PyTorch F.cosine_similarity clamps each norm separately at eps:
    #   dot / (max(|x|, eps) * max(|y|, eps))  ==  dot * rsqrt(max(xx, eps^2)) * rsqrt(max(yy, eps^2))
    r = lax.rsqrt(jnp.maximum(xx, eps * eps)) * lax.rsqrt(jnp.maximum(yy, eps * eps))
    o_ref[...] = (dot * r * inv_temp).astype(o_ref.dtype)


def _rowwise_cosine_ktiled_kernel(x_ref, y_ref, o_ref, dot_ref, xx_ref, yy_ref, *,
                                  inv_temp, eps):
    """Huge-D fallback: K-tiled reduction with fp32 VMEM accumulators."""
    k = pl.program_id(1)

    @pl.when(k == 0)
    def _init():
        dot_ref[...] = jnp.zeros_like(dot_ref)
        xx_ref[...] = jnp.zeros_like(xx_ref)
        yy_ref[...] = jnp.zeros_like(yy_ref)

    x = x_ref[...].astype(jnp.float32)
    y = y_ref[...].astype(jnp.float32)
    dot_ref[...] += jnp.sum(x * y, axis=-1, keepdims=True)
    xx_ref[...] += jnp.sum(x * x, axis=-1, keepdims=True)
    yy_ref[...] += jnp.sum(y * y, axis=-1, keepdims=True)

    @pl.when(k == pl.num_programs(1) - 1)
    def _finalize():
        r = (lax.rsqrt(jnp.maximum(xx_ref[...], eps * eps)) *
             lax.rsqrt(jnp.maximum(yy_ref[...], eps * eps)))
        o_ref[...] = (dot_ref[...] * r * inv_temp).astype(o_ref.dtype)


def _pairwise_cosine_kernel(x_ref, y_ref, o_ref, *, inv_temp, eps):
    """cos(x_i, y_j) * inv_temp for a (TM, TN) output tile via the MXU."""
    x = x_ref[...].astype(jnp.float32)              # (TM, D)
    y = y_ref[...].astype(jnp.float32)              # (TN, D)
    rnx = lax.rsqrt(jnp.maximum(jnp.sum(x * x, axis=-1, keepdims=True), eps * eps))  # (TM, 1)
    rny = lax.rsqrt(jnp.maximum(jnp.sum(y * y, axis=-1, keepdims=True), eps * eps))  # (TN, 1)
    # x @ (y * rny).T : contract the feature axis of both operands (q @ k.T pattern).
    s = lax.dot_general(x, y * rny, (((1,), (1,)), ((), ())),
                        preferred_element_type=jnp.float32)                          # (TM, TN)
    o_ref[...] = (s * rnx * inv_temp).astype(o_ref.dtype)


# ------------------------------ wrappers --------------------------------------

def _pairwise_cosine(x2, y2, *, temp, eps):
    """x2: (B1, D), y2: (B2, D) -> (B1, B2) pairwise cosine / temp (MXU matmul)."""
    B1, D = x2.shape
    B2, _ = y2.shape
    out_dtype = _out_dtype(x2, y2)
    block_target, cap = _budgets()

    def pick_rows(b):
        cap_rows = max(8, (block_target // (4 * D)) // 8 * 8)
        if b <= cap_rows:
            return b                                        # full extent: always legal
        return min(512, max(128, cap_rows // 128 * 128))    # multiple of 128

    TM = pick_rows(B1)
    TN = pick_rows(B2)
    grid = (pl.cdiv(B1, TM), pl.cdiv(B2, TN))

    est = (4 * (2 * TM * D + 2 * TN * D)
           + jnp.dtype(out_dtype).itemsize * 2 * TM * max(TN, 128))
    kernel = functools.partial(_pairwise_cosine_kernel,
                               inv_temp=float(1.0 / temp), eps=float(eps))
    return pl.pallas_call(
        kernel,
        out_shape=jax.ShapeDtypeStruct((B1, B2), out_dtype),
        grid_spec=pltpu.PrefetchScalarGridSpec(
            num_scalar_prefetch=0,
            grid=grid,
            in_specs=[
                pl.BlockSpec((TM, D), lambda i, j: (i, 0)),
                pl.BlockSpec((TN, D), lambda i, j: (j, 0)),
            ],
            out_specs=pl.BlockSpec((TM, TN), lambda i, j: (i, j)),
        ),
        compiler_params=pltpu.CompilerParams(
            dimension_semantics=("parallel", "parallel"),
            vmem_limit_bytes=_vmem_limit(est, cap),
        ),
    )(x2, y2)


def _rowwise_cosine(xb, yb, *, temp, eps):
    """xb, yb: (N, D), row-aligned; returns (N,) = cos(x_r, y_r) / temp."""
    N, D = xb.shape
    out_dtype = _out_dtype(xb, yb)
    block_target, cap = _budgets()
    kernel_kwargs = dict(inv_temp=float(1.0 / temp), eps=float(eps))
    out_isize = jnp.dtype(out_dtype).itemsize

    def pick_tile_m(tile_k):
        if N < 8:
            return N                                        # == full dim: always legal
        tm = max(8, (block_target // (4 * tile_k)) // 8 * 8)
        tm = min(tm, _round_up(pl.cdiv(N, 2), 8))           # >= 2 row tiles (v7x: 2 TCs)
        return max(8, tm)

    # Preferred path: the whole feature dim as one block (no reduction axis,
    # no accumulators, no init/finalize).  Holds for any realistic D.
    if 4 * 8 * D <= block_target:
        TILE_M = pick_tile_m(D)
        est = 4 * (2 * 2 * TILE_M * D) + out_isize * 2 * TILE_M * 128
        out = pl.pallas_call(
            functools.partial(_rowwise_cosine_kernel, **kernel_kwargs),
            out_shape=jax.ShapeDtypeStruct((N, 1), out_dtype),
            grid_spec=pltpu.PrefetchScalarGridSpec(
                num_scalar_prefetch=0,
                grid=(pl.cdiv(N, TILE_M),),
                in_specs=[pl.BlockSpec((TILE_M, D), lambda i: (i, 0)),
                          pl.BlockSpec((TILE_M, D), lambda i: (i, 0))],
                out_specs=pl.BlockSpec((TILE_M, 1), lambda i: (i, 0)),
            ),
            compiler_params=pltpu.CompilerParams(
                dimension_semantics=("parallel",),
                vmem_limit_bytes=_vmem_limit(est, cap),
            ),
        )(xb, yb)
        return out[:, 0]

    # Rare huge-D fallback: K-tiled reduction (exact K blocks; zero-pad K only
    # when no nice divisor exists — padding zeros leaves dot/norms unchanged).
    TILE_K = next((t for t in (4096, 2048, 1024, 512, 256, 128) if D % t == 0), 512)
    D_pad = _round_up(D, TILE_K)
    if D_pad != D:
        xb = jnp.pad(xb, ((0, 0), (0, D_pad - D)))
        yb = jnp.pad(yb, ((0, 0), (0, D_pad - D)))
    TILE_M = pick_tile_m(TILE_K)
    est = (4 * (2 * 2 * TILE_M * TILE_K)
           + out_isize * 2 * TILE_M * 128
           + 3 * 4 * TILE_M * 128)
    out = pl.pallas_call(
        functools.partial(_rowwise_cosine_ktiled_kernel, **kernel_kwargs),
        out_shape=jax.ShapeDtypeStruct((N, 1), out_dtype),
        grid_spec=pltpu.PrefetchScalarGridSpec(
            num_scalar_prefetch=0,
            grid=(pl.cdiv(N, TILE_M), D_pad // TILE_K),
            in_specs=[pl.BlockSpec((TILE_M, TILE_K), lambda i, k: (i, k)),
                      pl.BlockSpec((TILE_M, TILE_K), lambda i, k: (i, k))],
            out_specs=pl.BlockSpec((TILE_M, 1), lambda i, k: (i, 0)),
            scratch_shapes=[pltpu.VMEM((TILE_M, 1), jnp.float32)] * 3,
        ),
        compiler_params=pltpu.CompilerParams(
            dimension_semantics=("parallel", "arbitrary"),
            vmem_limit_bytes=_vmem_limit(est, cap),
        ),
    )(xb, yb)
    return out[:, 0]


def pallas_cosine_similarity(x, y, *, temp, eps=1e-8):
    """nn.CosineSimilarity(dim=-1)(x, y) / temp with broadcasting over leading dims."""
    x = jnp.asarray(x)
    y = jnp.asarray(y)
    assert x.shape[-1] == y.shape[-1], "feature dims must match"
    D = x.shape[-1]

    # SimCSE-style pairwise pattern: (B1, 1, D) x (1, B2, D) -> (B1, B2)
    # (and the mirrored form).  Routed through the MXU kernel instead of
    # materialising the broadcast in HBM.
    if x.ndim == 3 and y.ndim == 3 and D <= _PAIRWISE_MAX_D:
        if x.shape[1] == 1 and y.shape[0] == 1:
            return _pairwise_cosine(x[:, 0, :], y[0], temp=temp, eps=eps)
        if x.shape[0] == 1 and y.shape[1] == 1:
            return _pairwise_cosine(y[:, 0, :], x[0], temp=temp, eps=eps)

    # General path: identical leading shapes stream straight through; other
    # broadcast patterns (rare for this module) are materialised.
    lead = jnp.broadcast_shapes(x.shape[:-1], y.shape[:-1])
    full = lead + (D,)
    xb = (x if x.shape == full else jnp.broadcast_to(x, full)).reshape(-1, D)
    yb = (y if y.shape == full else jnp.broadcast_to(y, full)).reshape(-1, D)
    out = _rowwise_cosine(xb, yb, temp=temp, eps=eps)
    return out.reshape(lead)


class Similarity:
    """Pallas port of the PyTorch `Similarity` module (cosine / temp)."""

    def __init__(self, temp):
        self.temp = float(temp)

    def __call__(self, x, y):
        return pallas_cosine_similarity(x, y, temp=self.temp)


# --------------------------------- main ---------------------------------------

if __name__ == "__main__":
    key = jax.random.PRNGKey(0)
    k1, k2, k3, k4, k5, k6 = jax.random.split(key, 6)

    temp = 0.05
    sim = Similarity(temp)

    def ref(x, y, eps=1e-8):
        xf = x.astype(jnp.float32)
        yf = y.astype(jnp.float32)
        dot = jnp.sum(xf * yf, axis=-1)
        nx = jnp.maximum(jnp.sqrt(jnp.sum(xf * xf, axis=-1)), eps)
        ny = jnp.maximum(jnp.sqrt(jnp.sum(yf * yf, axis=-1)), eps)
        return dot / (nx * ny) / temp

    # 1) Element-wise use: (batch, hidden) vs (batch, hidden).
    x = jax.random.normal(k1, (2, 32), dtype=jnp.float32)
    y = jax.random.normal(k2, (2, 32), dtype=jnp.float32)
    o = sim(x, y)
    jax.block_until_ready(o)
    assert o.shape == (2,)
    assert jnp.allclose(o, ref(x, y), rtol=1e-3, atol=1e-3)

    # 2) SimCSE pairwise use: (B, 1, D) x (1, B, D) -> (B, B) via the MXU path.
    B, D = 16, 64
    z1 = jax.random.normal(k3, (B, D), dtype=jnp.float32)
    z2 = jax.random.normal(k4, (B, D), dtype=jnp.float32)
    o_pair = sim(z1[:, None, :], z2[None, :, :])
    jax.block_until_ready(o_pair)
    assert o_pair.shape == (B, B)
    assert jnp.allclose(o_pair, ref(z1[:, None, :], z2[None, :, :]),
                        rtol=2e-2, atol=1e-1)   # MXU default precision

    # 3) Row-tiled element-wise path with a partial last row block.
    x3 = jax.random.normal(k5, (600, 256), dtype=jnp.float32)
    y3 = jax.random.normal(k6, (600, 256), dtype=jnp.float32)
    o3 = sim(x3, y3)
    jax.block_until_ready(o3)
    assert o3.shape == (600,)
    assert jnp.allclose(o3, ref(x3, y3), rtol=1e-3, atol=1e-3)

    print("KERNEL_OK")
</pallas_src>

<mosaic_0001>
module attributes {stable_mosaic.version = 11 : i64} {
  func.func @_rowwise_cosine_kernel(%arg0: i32, %arg1: memref<2x32xf32, #tpu.memory_space<vmem>>, %arg2: memref<2x32xf32, #tpu.memory_space<vmem>>, %arg3: memref<2x1xf32, #tpu.memory_space<vmem>>) attributes {dimension_semantics = [#tpu.dimension_semantics<parallel>], iteration_bounds = array<i64: 1>, scalar_prefetch = 0 : i64, scratch_operands = 0 : i64, tpu.core_type = #tpu.core_type<tc>, window_params = [{transform_indices = @transform_0, window_bounds = array<i64: 2, 32>}, {transform_indices = @transform_1, window_bounds = array<i64: 2, 32>}, {transform_indices = @transform_2, window_bounds = array<i64: 2, 1>}]} {
    %c0 = arith.constant 0 : index
    %c0_0 = arith.constant 0 : index
    %0 = vector.load %arg1[%c0, %c0_0] : memref<2x32xf32, #tpu.memory_space<vmem>>, vector<2x32xf32>
    %c0_1 = arith.constant 0 : index
    %c0_2 = arith.constant 0 : index
    %1 = vector.load %arg2[%c0_1, %c0_2] : memref<2x32xf32, #tpu.memory_space<vmem>>, vector<2x32xf32>
    %2 = arith.mulf %0, %1 : vector<2x32xf32>
    %cst = arith.constant dense<0.000000e+00> : vector<2xf32>
    %3 = vector.multi_reduction <add>, %2, %cst [1] : vector<2x32xf32> to vector<2xf32>
    %4 = vector.shape_cast %3 : vector<2xf32> to vector<2x1xf32>
    %5 = arith.mulf %0, %0 : vector<2x32xf32>
    %cst_3 = arith.constant dense<0.000000e+00> : vector<2xf32>
    %6 = vector.multi_reduction <add>, %5, %cst_3 [1] : vector<2x32xf32> to vector<2xf32>
    %7 = vector.shape_cast %6 : vector<2xf32> to vector<2x1xf32>
    %8 = arith.mulf %1, %1 : vector<2x32xf32>
    %cst_4 = arith.constant dense<0.000000e+00> : vector<2xf32>
    %9 = vector.multi_reduction <add>, %8, %cst_4 [1] : vector<2x32xf32> to vector<2xf32>
    %10 = vector.shape_cast %9 : vector<2xf32> to vector<2x1xf32>
    %cst_5 = arith.constant 1.000000e-16 : f32
    %11 = vector.broadcast %cst_5 : f32 to vector<2x1xf32>
    %12 = arith.maximumf %7, %11 : vector<2x1xf32>
    %13 = math.rsqrt %12 : vector<2x1xf32>
    %cst_6 = arith.constant 1.000000e-16 : f32
    %14 = vector.broadcast %cst_6 : f32 to vector<2x1xf32>
    %15 = arith.maximumf %10, %14 : vector<2x1xf32>
    %16 = math.rsqrt %15 : vector<2x1xf32>
    %17 = arith.mulf %13, %16 : vector<2x1xf32>
    %18 = arith.mulf %4, %17 : vector<2x1xf32>
    %cst_7 = arith.constant 2.000000e+01 : f32
    %19 = vector.broadcast %cst_7 : f32 to vector<2x1xf32>
    %20 = arith.mulf %18, %19 : vector<2x1xf32>
    %c0_8 = arith.constant 0 : index
    %c0_9 = arith.constant 0 : index
    %21 = vector.load %arg3[%c0_8, %c0_9] : memref<2x1xf32, #tpu.memory_space<vmem>>, vector<2x1xf32>
    tpu.vector_store %arg3[%c0_8, %c0_9], %20 {strides = array<i32>} : memref<2x1xf32, #tpu.memory_space<vmem>>, vector<2x1xf32>,
    return
  }
  func.func @transform_0(%arg0: i32) -> (i32, i32) {
    %c0_i32 = arith.constant 0 : i32
    %c0_i32_0 = arith.constant 0 : i32
    return %arg0, %c0_i32 : i32, i32
  }
  func.func @transform_1(%arg0: i32) -> (i32, i32) {
    %c0_i32 = arith.constant 0 : i32
    %c0_i32_0 = arith.constant 0 : i32
    return %arg0, %c0_i32 : i32, i32
  }
  func.func @transform_2(%arg0: i32) -> (i32, i32) {
    %c0_i32 = arith.constant 0 : i32
    %c0_i32_0 = arith.constant 0 : i32
    return %arg0, %c0_i32 : i32, i32
  }
}

</mosaic_0001>

<llo_original>
// kernel: tpu_custom_call.1
$region0: #{tpu_custom_call.1}
  #allocation0 [shape = 'u32[]', space=smem, size = 0x4, offset = 0x4, fixed_abs, tag = 'smem constant byte address 0x4 - core index']
  #allocation1 [shape = 'u32[144,128]{1,0:T(1,128)}', space=vmem, size = 0x12000, scoped, tag = 'internal scratch']
  %s0 = inlined_call_operand.hbm [shape: f32[2,32], index: 0, kind: input, shape index: {}]
  %s1 = inlined_call_operand.vmem [shape: f32[2,32], index: 1, kind: input, shape index: {}]
  %s2 = inlined_call_operand.vmem [shape: f32[2,1], index: 2, kind: output, shape index: {}]
  %s3 = sld [smem:[#allocation0]]
  $region22: #{tpu_custom_call.1} parent=0
    _
  %s5 = ssub.s32 1, %s3
  %s6 = scalar_select 0, %s5, %s3
  $region1: #{tpu_custom_call.1} parent=0
    #allocation2 [shape = 'u8[1024]{0}', space=vmem, size = 0x400, scoped, tag = 'input window, operand 0, single buffered']
    #allocation3 [shape = 's32[1]{0}', space=sflag, size = 0x4, scoped, tag = 'scoped memory for tpu_custom_call.1']
    %7 = vsyncpa [#allocation3], 0
    // Predicated region
    $region2: #{tpu_custom_call.1} parent=1 // pred_check
      _
    $region3: #{tpu_custom_call.1} parent=1 // pred_check_branch
      %9 = sbr.rel (0) target = $region5
    $region4: #{tpu_custom_call.1} parent=1 // pred_region
      %s11 = ssub.s32 32, 32
      %12 = vsyncadd [#allocation3], %s11
      %s14 = sshll.u32 [#allocation2], 4
      %s15 = int_to_ptr.vmem [resolvable:$true] %s14
      %17 = dma.hbm_to_vmem [thread:$0]  %s0, 32, %s15, [#allocation3]
    $region5: #{tpu_custom_call.1} parent=1 // pred_fallthru
      _
    // Predicated region
    $region6: #{tpu_custom_call.1} parent=1 // pred_check
      _
    $region7: #{tpu_custom_call.1} parent=1 // pred_check_branch
      %19 = sbr.rel (0) target = $region9
    $region8: #{tpu_custom_call.1} parent=1 // pred_region
      _
    $region9: #{tpu_custom_call.1} parent=1 // pred_fallthru
      _
    // Predicated region
    $region10: #{tpu_custom_call.1} parent=1 // pred_check
      _
    $region11: #{tpu_custom_call.1} parent=1 // pred_check_branch
      %21 = sbr.rel (0) target = $region13
    $region12: #{tpu_custom_call.1} parent=1 // pred_region
      %22 = dma.done [#allocation3], 32
    $region13: #{tpu_custom_call.1} parent=1 // pred_fallthru
      _
    %v23 = vld [vmem:[#allocation2] sm:$0x3]
    %v24 = vld [vmem:[%s1] sm:$0x3]
    %v25 = vmul.f32 %v23, %v24
    %vm26 = vcmask 254976
    %v27 = vsel %vm26, %v25, 0.0
    %28 = vadd.xlane.f32.xlu0 %v27
    %v29 = vpop.xlane.xlu0 %28
    %v30 = vmul.f32 %v23, %v23
    %v31 = vsel %vm26, %v30, 0.0
    %32 = vadd.xlane.f32.xlu0 %v31
    %v33 = vpop.xlane.xlu0 %32
    %v34 = vmul.f32 %v24, %v24
    %v35 = vsel %vm26, %v34, 0.0
    %36 = vadd.xlane.f32.xlu0 %v35
    %v37 = vpop.xlane.xlu0 %36
    %v38 = vmax.f32 %v33, 1e-16
    %v39 = vrsqrt.pop %v38
    %v40 = vmax.f32 %v37, 1e-16
    %v41 = vrsqrt.pop %v40
    %v42 = vmul.f32 %v39, %v41
    %v43 = vmul.f32 %v29, %v42
    %v44 = vmul.f32 %v43, 20.0
    %vm45 = vcmask 1024
    %46 = vst.msk [vmem:[%s2] sm:$0x3] %vm45, %v44
    // Predicated region
    $region14: #{tpu_custom_call.1} parent=1 // pred_check
      _
    $region15: #{tpu_custom_call.1} parent=1 // pred_check_branch
      %48 = sbr.rel (0) target = $region17
    $region16: #{tpu_custom_call.1} parent=1 // pred_region
      _
    $region17: #{tpu_custom_call.1} parent=1 // pred_fallthru
      _
    // Predicated region
    $region18: #{tpu_custom_call.1} parent=1 // pred_check
      _
    $region19: #{tpu_custom_call.1} parent=1 // pred_check_branch
      %50 = sbr.rel (0) target = $region21
    $region20: #{tpu_custom_call.1} parent=1 // pred_region
      _
    $region21: #{tpu_custom_call.1} parent=1 // pred_fallthru
      _
    %51 = vsyncpa [#allocation3], 1

</llo_original>
